<compile_context>
chip_gen: v5e
topology: v5e:2x2
jax: 0.10.0
libtpu: 0.0.40
codegen_flags: <defaults>
</compile_context>

<pallas_src>
import functools
import math

import jax
import jax.numpy as jnp
from jax.experimental import pallas as pl
from jax.experimental.pallas import tpu as pltpu

LN_EPS = 1e-12  # BertLayerNorm variance epsilon


def _tpu_budget():
    """Generation-aware budgets: v7x has 64 MiB VMEM/TC, v5e/v6e have 128 MiB."""
    phys = None
    try:
        info = pltpu.get_tpu_info()
        for attr in ("vmem_capacity_bytes", "vmem_size_bytes", "vmem_bytes"):
            v = getattr(info, attr, None)
            if v:
                phys = int(v)
                break
    except Exception:
        phys = None
    if phys is None or phys <= 64 * 1024 * 1024:
        # v7x-class (or unknown): stay well inside 64 MiB physical VMEM.
        return {"vmem_limit": 48 * 1024 * 1024, "max_seq_tile": 256}
    # v5e / v6e: 128 MiB physical -> allow bigger resident blocks / tiles.
    return {"vmem_limit": 100 * 1024 * 1024, "max_seq_tile": 512}


_BUDGET = _tpu_budget()
VMEM_LIMIT = _BUDGET["vmem_limit"]
MAX_SEQ_TILE = _BUDGET["max_seq_tile"]

# Weights are revisited with a constant block index across the grid -> single-buffer them.
_WEIGHT_PIPELINE = {"pipeline_mode": pl.Buffered(1)} if hasattr(pl, "Buffered") else {}


# ----------------------------- in-kernel helpers ------------------------------
def _layer_norm(x, g, b):
    mu = jnp.mean(x, axis=-1, keepdims=True)
    var = jnp.mean((x - mu) ** 2, axis=-1, keepdims=True)
    return (x - mu) * jax.lax.rsqrt(var + LN_EPS) * g + b


def _gelu(x):
    # tanh-based GELU (EUP-friendly).
    # TODO(synk): original module uses exact erf-based GELU; erf has no guaranteed Mosaic
    # lowering, so the standard tanh approximation is used (|diff| ~1e-3, below bf16 noise).
    c = math.sqrt(2.0 / math.pi)
    return 0.5 * x * (1.0 + jnp.tanh(c * (x + 0.044715 * x * x * x)))


# --------------------------------- kernels ------------------------------------
def _emb_layernorm_kernel(seg_ref, we_ref, pe_ref, tte_ref, g_ref, b_ref, o_ref):
    # Fused (word + position + token-type) embedding sum + LayerNorm over a (1, TS, H) tile.
    x = we_ref[0].astype(jnp.float32) + pe_ref[...].astype(jnp.float32)   # [TS, H]
    seg = seg_ref[0]                                                       # [TS, 1] int32
    tte = tte_ref[...].astype(jnp.float32)                                 # [TV, H] (tiny, resident)
    for t in range(tte_ref.shape[0]):  # type_vocab_size (==2): unrolled masked sum gather
        x = x + jnp.where(seg == t, tte[t:t + 1, :], 0.0)
    o_ref[0] = _layer_norm(x, g_ref[...], b_ref[...]).astype(o_ref.dtype)


def _qkv_proj_kernel(x_ref, wqkv_ref, bqkv_ref, q_ref, k_ref, v_ref, *, num_heads):
    # Fused QKV projection (bf16 MXU, f32 accumulation); softmax scale folded into Q once.
    H = x_ref.shape[-1]
    dh = H // num_heads
    scale = 1.0 / math.sqrt(dh)
    qkv = jnp.dot(x_ref[0], wqkv_ref[...],
                  preferred_element_type=jnp.float32) + bqkv_ref[...]      # [TS, 3H] f32
    q_ref[0] = (qkv[:, 0 * H:1 * H] * scale).astype(q_ref.dtype)
    k_ref[0] = qkv[:, 1 * H:2 * H].astype(k_ref.dtype)
    v_ref[0] = qkv[:, 2 * H:3 * H].astype(v_ref.dtype)


def _attention_kernel(x_ref, mask_ref, q_ref, k_ref, v_ref,
                      wo_ref, bo_ref, ln1g_ref, ln1b_ref, out_ref, *, num_heads):
    TQ = q_ref.shape[1]
    H = q_ref.shape[2]
    S = k_ref.shape[1]
    dh = H // num_heads
    mask = mask_ref[0]                                          # [1, S] additive mask, f32

    # Head-major [nh, rows, dh] layout so both attention matmuls are clean leading-batch-dim
    # dot_generals (no hidden XLU transposes around the MXU pushes).
    q = jnp.transpose(q_ref[0].reshape(TQ, num_heads, dh), (1, 0, 2))   # bf16 [nh, TQ, dh]
    k = jnp.transpose(k_ref[0].reshape(S, num_heads, dh), (1, 0, 2))    # bf16 [nh, S, dh]
    v = jnp.transpose(v_ref[0].reshape(S, num_heads, dh), (1, 0, 2))    # bf16 [nh, S, dh]

    scores = jnp.einsum("nqd,nkd->nqk", q, k,
                        preferred_element_type=jnp.float32)              # [nh, TQ, S] f32
    scores = scores + mask                                               # broadcast heads / q-rows
    scores = scores - jnp.max(scores, axis=-1, keepdims=True)
    p = jnp.exp(scores)
    p = p * pl.reciprocal(jnp.sum(p, axis=-1, keepdims=True), approx=True)

    ctx = jnp.einsum("nqk,nkd->nqd", p.astype(jnp.bfloat16), v,
                     preferred_element_type=jnp.float32)                 # [nh, TQ, dh] f32
    ctx = jnp.transpose(ctx, (1, 0, 2)).reshape(TQ, H)

    attn = jnp.dot(ctx.astype(jnp.bfloat16), wo_ref[...],
                   preferred_element_type=jnp.float32) + bo_ref[...]
    out_ref[0] = _layer_norm(attn + x_ref[0].astype(jnp.float32),
                             ln1g_ref[...], ln1b_ref[...]).astype(out_ref.dtype)


def _ffn_kernel(h1_ref, wi_ref, bi_ref, wo2_ref, bo2_ref, ln2g_ref, ln2b_ref, out_ref):
    # Resident-weight FFN: full [TS,H]@[H,I] -> gelu -> [TS,I]@[I,H] in one grid step.
    h1_bf = h1_ref[0]                                                     # bf16 [TS, H]
    inter = jnp.dot(h1_bf, wi_ref[...],
                    preferred_element_type=jnp.float32) + bi_ref[...]     # [TS, I] f32
    inter = _gelu(inter)
    ffn = jnp.dot(inter.astype(jnp.bfloat16), wo2_ref[...],
                  preferred_element_type=jnp.float32) + bo2_ref[...]      # [TS, H] f32
    out_ref[0] = _layer_norm(ffn + h1_bf.astype(jnp.float32),
                             ln2g_ref[...], ln2b_ref[...]).astype(out_ref.dtype)


def _pooler_kernel(x_ref, w_ref, b_ref, o_ref):
    # x_ref is only the [CLS] rows: [B, H] bf16
    o_ref[...] = jnp.tanh(
        jnp.dot(x_ref[...], w_ref[...], preferred_element_type=jnp.float32) + b_ref[...])


# --------------------------------- wrappers ------------------------------------
def _const_spec(shape):
    """Constant-index-map (weight/bias/LN) spec, single-buffered and resident."""
    n = len(shape)
    return pl.BlockSpec(shape, lambda *_: (0,) * n, **_WEIGHT_PIPELINE)


def _seq_tile(S, max_tile=MAX_SEQ_TILE):
    for t in (512, 256, 128):
        if t <= max_tile and S % t == 0:
            return t
    return S


def _q_tile(S):
    return 128 if S % 128 == 0 else S


def emb_layernorm(seg3, we, pe, tte, g, b):
    B, S, H = we.shape
    TS = _seq_tile(S)
    return pl.pallas_call(
        _emb_layernorm_kernel,
        out_shape=jax.ShapeDtypeStruct((B, S, H), jnp.bfloat16),
        grid=(B, S // TS),
        in_specs=[
            pl.BlockSpec((1, TS, 1), lambda b_, s: (b_, s, 0)),   # segment ids
            pl.BlockSpec((1, TS, H), lambda b_, s: (b_, s, 0)),   # gathered word embeddings
            pl.BlockSpec((TS, H), lambda b_, s: (s, 0)),          # position embeddings
            _const_spec(tte.shape),
            _const_spec(g.shape),
            _const_spec(b.shape),
        ],
        out_specs=pl.BlockSpec((1, TS, H), lambda b_, s: (b_, s, 0)),
        compiler_params=pltpu.CompilerParams(
            dimension_semantics=("parallel", "parallel"),
            vmem_limit_bytes=VMEM_LIMIT),
    )(seg3, we, pe, tte, g, b)


def qkv_proj(x, lp, num_heads):
    B, S, H = x.shape
    TS = _seq_tile(S)
    out = jax.ShapeDtypeStruct((B, S, H), jnp.bfloat16)
    out_spec = pl.BlockSpec((1, TS, H), lambda b_, s: (b_, s, 0))
    return pl.pallas_call(
        functools.partial(_qkv_proj_kernel, num_heads=num_heads),
        out_shape=(out, out, out),
        grid=(B, S // TS),
        in_specs=[
            pl.BlockSpec((1, TS, H), lambda b_, s: (b_, s, 0)),
            _const_spec(lp["wqkv"].shape),
            _const_spec(lp["bqkv"].shape),
        ],
        out_specs=(out_spec, out_spec, out_spec),
        compiler_params=pltpu.CompilerParams(
            dimension_semantics=("parallel", "parallel"),
            vmem_limit_bytes=VMEM_LIMIT),
        cost_estimate=pl.CostEstimate(
            flops=int(6 * B * S * H * H),
            transcendentals=0,
            bytes_accessed=int(2 * 4 * B * S * H + 2 * 3 * H * H)),
    )(x, lp["wqkv"], lp["bqkv"])


def attention_block(x, add_mask, q, k, v, lp, num_heads):
    B, S, H = x.shape
    TQ = _q_tile(S)
    flops = B * (4 * S * S * H + 2 * S * H * H)
    return pl.pallas_call(
        functools.partial(_attention_kernel, num_heads=num_heads),
        out_shape=jax.ShapeDtypeStruct((B, S, H), jnp.bfloat16),
        grid=(B, S // TQ),
        in_specs=[
            pl.BlockSpec((1, TQ, H), lambda b_, qi: (b_, qi, 0)),   # x residual (Q-tile rows)
            pl.BlockSpec((1, 1, S), lambda b_, qi: (b_, 0, 0)),     # additive attention mask
            pl.BlockSpec((1, TQ, H), lambda b_, qi: (b_, qi, 0)),   # Q tile
            pl.BlockSpec((1, S, H), lambda b_, qi: (b_, 0, 0)),     # full-sequence K (resident per b)
            pl.BlockSpec((1, S, H), lambda b_, qi: (b_, 0, 0)),     # full-sequence V (resident per b)
            _const_spec(lp["wo"].shape),
            _const_spec(lp["bo"].shape),
            _const_spec(lp["ln1_g"].shape),
            _const_spec(lp["ln1_b"].shape),
        ],
        out_specs=pl.BlockSpec((1, TQ, H), lambda b_, qi: (b_, qi, 0)),
        compiler_params=pltpu.CompilerParams(
            dimension_semantics=("parallel", "parallel"),
            vmem_limit_bytes=VMEM_LIMIT),
        cost_estimate=pl.CostEstimate(
            flops=int(flops),
            transcendentals=int(B * num_heads * S * S),
            bytes_accessed=int(2 * 5 * B * S * H + 2 * H * H + 4 * B * S)),
    )(x, add_mask, q, k, v, lp["wo"], lp["bo"], lp["ln1_g"], lp["ln1_b"])


def ffn_block(h1, lp):
    B, S, H = h1.shape
    I = lp["wi"].shape[1]
    TS = _seq_tile(S)
    return pl.pallas_call(
        _ffn_kernel,
        out_shape=jax.ShapeDtypeStruct((B, S, H), jnp.bfloat16),
        grid=(B, S // TS),
        in_specs=[
            pl.BlockSpec((1, TS, H), lambda b_, s: (b_, s, 0)),
            _const_spec(lp["wi"].shape),    # resident: streamed once, not per (b, s-tile)
            _const_spec(lp["bi"].shape),
            _const_spec(lp["wo2"].shape),   # resident
            _const_spec(lp["bo2"].shape),
            _const_spec(lp["ln2_g"].shape),
            _const_spec(lp["ln2_b"].shape),
        ],
        out_specs=pl.BlockSpec((1, TS, H), lambda b_, s: (b_, s, 0)),
        compiler_params=pltpu.CompilerParams(
            dimension_semantics=("parallel", "parallel"),
            vmem_limit_bytes=VMEM_LIMIT),
        cost_estimate=pl.CostEstimate(
            flops=int(4 * B * S * H * I),
            transcendentals=int(B * S * I),
            bytes_accessed=int(2 * 2 * B * S * H + 2 * 2 * H * I)),
    )(h1, lp["wi"], lp["bi"], lp["wo2"], lp["bo2"], lp["ln2_g"], lp["ln2_b"])


def pooler(x_cls, w, b):
    B, H = x_cls.shape
    return pl.pallas_call(
        _pooler_kernel,
        out_shape=jax.ShapeDtypeStruct((B, H), jnp.float32),
    )(x_cls, w, b)


# ---------------------------- parameter initialization --------------------------
def init_params(key, cfg):
    H, I = cfg["hidden_size"], cfg["intermediate_size"]
    std = cfg["initializer_range"]

    def nrm(k, shape, dtype=jnp.bfloat16):
        return (jax.random.normal(k, shape, jnp.float32) * std).astype(dtype)

    keys = iter(jax.random.split(key, 8 + 8 * cfg["num_hidden_layers"]))
    params = {
        "word_emb": nrm(next(keys), (cfg["vocab_size"], H)),                 # bf16
        "pos_emb": nrm(next(keys), (cfg["max_position_embeddings"], H)),     # bf16
        "tok_type_emb": nrm(next(keys), (cfg["type_vocab_size"], H)),        # bf16
        "emb_ln_g": jnp.ones((1, H), jnp.float32),
        "emb_ln_b": jnp.zeros((1, H), jnp.float32),
        "pool_w": nrm(next(keys), (H, H)),                                   # bf16
        "pool_b": jnp.zeros((1, H), jnp.float32),
        "layers": [],
    }
    for _ in range(cfg["num_hidden_layers"]):
        lp = {
            # fused Wq|Wk|Wv -> one [H, 3H] matmul weight (bf16); biases / LN params f32
            "wqkv": nrm(next(keys), (H, 3 * H)),
            "bqkv": jnp.zeros((1, 3 * H), jnp.float32),
            "wo": nrm(next(keys), (H, H)), "bo": jnp.zeros((1, H), jnp.float32),
            "ln1_g": jnp.ones((1, H), jnp.float32), "ln1_b": jnp.zeros((1, H), jnp.float32),
            "wi": nrm(next(keys), (H, I)), "bi": jnp.zeros((1, I), jnp.float32),
            "wo2": nrm(next(keys), (I, H)), "bo2": jnp.zeros((1, H), jnp.float32),
            "ln2_g": jnp.ones((1, H), jnp.float32), "ln2_b": jnp.zeros((1, H), jnp.float32),
        }
        params["layers"].append(lp)
    return params


# ----------------------------------- forward ------------------------------------
def bert_forward(params, input_ids, segment_ids, padding_mask, cfg):
    """Semantics of farm Bert.forward(..., output_all_encoded_layers=False):
    returns (sequence_output [B,S,H] (bf16), pooled_output [B,H] (f32))."""
    B, S = input_ids.shape

    # Word-embedding gather stays XLA-side (vocab table cannot be VMEM-resident).
    # TODO(synk): optionally fuse the word gather via PrefetchScalarGridSpec + per-row DMA.
    we = jnp.take(params["word_emb"], input_ids, axis=0)          # [B,S,H] bf16
    pe = params["pos_emb"][:S]                                     # [S,H]   bf16
    seg3 = segment_ids.astype(jnp.int32).reshape(B, S, 1)
    # TODO(synk): dropout layers are identity (eval mode); no RNG dropout implemented.
    h = emb_layernorm(seg3, we, pe, params["tok_type_emb"],
                      params["emb_ln_g"], params["emb_ln_b"])

    # extended_attention_mask = (1 - mask) * -10000, broadcast over heads / query positions.
    add_mask = ((1.0 - padding_mask.astype(jnp.float32)) * -10000.0).reshape(B, 1, S)

    nh = cfg["num_attention_heads"]
    for lp in params["layers"]:
        q, k, v = qkv_proj(h, lp, nh)
        h1 = attention_block(h, add_mask, q, k, v, lp, nh)
        h = ffn_block(h1, lp)

    pooled = pooler(h[:, 0, :], params["pool_w"], params["pool_b"])
    return h, pooled


# ------------------------------------- main --------------------------------------
if __name__ == "__main__":
    cfg = dict(
        vocab_size=100,
        hidden_size=32,
        num_hidden_layers=2,
        num_attention_heads=4,
        intermediate_size=64,
        max_position_embeddings=16,
        type_vocab_size=2,
        initializer_range=0.02,
    )
    B, S = 2, 8

    key = jax.random.PRNGKey(0)
    kp, ki, ks = jax.random.split(key, 3)
    params = init_params(kp, cfg)

    input_ids = jax.random.randint(ki, (B, S), 0, cfg["vocab_size"], dtype=jnp.int32)
    segment_ids = jax.random.randint(ks, (B, S), 0, cfg["type_vocab_size"], dtype=jnp.int32)
    padding_mask = jnp.array([[1, 1, 1, 1, 1, 1, 1, 1],
                              [1, 1, 1, 1, 1, 1, 0, 0]], dtype=jnp.int32)

    seq_out, pooled = bert_forward(params, input_ids, segment_ids, padding_mask, cfg)
    jax.block_until_ready((seq_out, pooled))
    assert seq_out.shape == (B, S, cfg["hidden_size"])
    assert pooled.shape == (B, cfg["hidden_size"])
    assert bool(jnp.all(jnp.isfinite(seq_out.astype(jnp.float32)))) and \
        bool(jnp.all(jnp.isfinite(pooled)))
    print("KERNEL_OK")
</pallas_src>

<mosaic_0001>
module attributes {stable_mosaic.version = 11 : i64} {
  func.func @_emb_layernorm_kernel(%arg0: i32, %arg1: i32, %arg2: memref<1x8x1xi32, #tpu.memory_space<vmem>>, %arg3: memref<1x8x32xbf16, #tpu.memory_space<vmem>>, %arg4: memref<8x32xbf16, #tpu.memory_space<vmem>>, %arg5: memref<2x32xbf16, #tpu.memory_space<vmem>>, %arg6: memref<1x32xf32, #tpu.memory_space<vmem>>, %arg7: memref<1x32xf32, #tpu.memory_space<vmem>>, %arg8: memref<1x8x32xbf16, #tpu.memory_space<vmem>>) attributes {dimension_semantics = [#tpu.dimension_semantics<parallel>, #tpu.dimension_semantics<parallel>], iteration_bounds = array<i64: 2, 1>, scalar_prefetch = 0 : i64, scratch_operands = 0 : i64, tpu.core_type = #tpu.core_type<tc>, window_params = [{transform_indices = @transform_0, window_bounds = array<i64: 1, 8, 1>}, {transform_indices = @transform_1, window_bounds = array<i64: 1, 8, 32>}, {transform_indices = @transform_2, window_bounds = array<i64: 8, 32>}, {pipeline_mode = #tpu.pipeline_mode<synchronous>, transform_indices = @transform_3, window_bounds = array<i64: 2, 32>}, {pipeline_mode = #tpu.pipeline_mode<synchronous>, transform_indices = @transform_4, window_bounds = array<i64: 1, 32>}, {pipeline_mode = #tpu.pipeline_mode<synchronous>, transform_indices = @transform_5, window_bounds = array<i64: 1, 32>}, {transform_indices = @transform_6, window_bounds = array<i64: 1, 8, 32>}]} {
    %c0 = arith.constant 0 : index
    %c0_0 = arith.constant 0 : index
    %c0_1 = arith.constant 0 : index
    %0 = vector.load %arg3[%c0, %c0_0, %c0_1] : memref<1x8x32xbf16, #tpu.memory_space<vmem>>, vector<1x8x32xbf16>
    %1 = vector.shape_cast %0 : vector<1x8x32xbf16> to vector<8x32xbf16>
    %2 = arith.extf %1 : vector<8x32xbf16> to vector<8x32xf32>
    %c0_2 = arith.constant 0 : index
    %c0_3 = arith.constant 0 : index
    %3 = vector.load %arg4[%c0_2, %c0_3] : memref<8x32xbf16, #tpu.memory_space<vmem>>, vector<8x32xbf16>
    %4 = arith.extf %3 : vector<8x32xbf16> to vector<8x32xf32>
    %5 = arith.addf %2, %4 : vector<8x32xf32>
    %c0_4 = arith.constant 0 : index
    %c0_5 = arith.constant 0 : index
    %c0_6 = arith.constant 0 : index
    %6 = vector.load %arg2[%c0_4, %c0_5, %c0_6] : memref<1x8x1xi32, #tpu.memory_space<vmem>>, vector<1x8x1xi32>
    %7 = vector.shape_cast %6 : vector<1x8x1xi32> to vector<8x1xi32>
    %c0_7 = arith.constant 0 : index
    %c0_8 = arith.constant 0 : index
    %8 = vector.load %arg5[%c0_7, %c0_8] : memref<2x32xbf16, #tpu.memory_space<vmem>>, vector<2x32xbf16>
    %9 = arith.extf %8 : vector<2x32xbf16> to vector<2x32xf32>
    %c0_i32 = arith.constant 0 : i32
    %10 = vector.broadcast %c0_i32 : i32 to vector<8x1xi32>
    %11 = arith.cmpi eq, %7, %10 : vector<8x1xi32>
    %12 = vector.extract_strided_slice %9 {offsets = [0, 0], sizes = [1, 32], strides = [1, 1]} : vector<2x32xf32> to vector<1x32xf32>
    %cst = arith.constant 0.000000e+00 : f32
    %13 = vector.shape_cast %11 : vector<8x1xi1> to vector<8x1xi1>
    %14 = vector.broadcast %13 : vector<8x1xi1> to vector<8x32xi1>
    %15 = vector.shape_cast %12 : vector<1x32xf32> to vector<1x32xf32>
    %16 = vector.broadcast %15 : vector<1x32xf32> to vector<8x32xf32>
    %17 = vector.broadcast %cst : f32 to vector<8x32xf32>
    %18 = arith.select %14, %16, %17 : vector<8x32xi1>, vector<8x32xf32>
    %19 = arith.addf %5, %18 : vector<8x32xf32>
    %c1_i32 = arith.constant 1 : i32
    %20 = vector.broadcast %c1_i32 : i32 to vector<8x1xi32>
    %21 = arith.cmpi eq, %7, %20 : vector<8x1xi32>
    %22 = vector.extract_strided_slice %9 {offsets = [1, 0], sizes = [1, 32], strides = [1, 1]} : vector<2x32xf32> to vector<1x32xf32>
    %cst_9 = arith.constant 0.000000e+00 : f32
    %23 = vector.shape_cast %21 : vector<8x1xi1> to vector<8x1xi1>
    %24 = vector.broadcast %23 : vector<8x1xi1> to vector<8x32xi1>
    %25 = vector.shape_cast %22 : vector<1x32xf32> to vector<1x32xf32>
    %26 = vector.broadcast %25 : vector<1x32xf32> to vector<8x32xf32>
    %27 = vector.broadcast %cst_9 : f32 to vector<8x32xf32>
    %28 = arith.select %24, %26, %27 : vector<8x32xi1>, vector<8x32xf32>
    %29 = arith.addf %19, %28 : vector<8x32xf32>
    %c0_10 = arith.constant 0 : index
    %c0_11 = arith.constant 0 : index
    %30 = vector.load %arg6[%c0_10, %c0_11] : memref<1x32xf32, #tpu.memory_space<vmem>>, vector<1x32xf32>
    %c0_12 = arith.constant 0 : index
    %c0_13 = arith.constant 0 : index
    %31 = vector.load %arg7[%c0_12, %c0_13] : memref<1x32xf32, #tpu.memory_space<vmem>>, vector<1x32xf32>
    %cst_14 = arith.constant dense<0.000000e+00> : vector<8xf32>
    %32 = vector.multi_reduction <add>, %29, %cst_14 [1] : vector<8x32xf32> to vector<8xf32>
    %33 = vector.shape_cast %32 : vector<8xf32> to vector<8x1xf32>
    %cst_15 = arith.constant 3.200000e+01 : f32
    %34 = vector.broadcast %cst_15 : f32 to vector<8x1xf32>
    %35 = arith.divf %33, %34 : vector<8x1xf32>
    %36 = vector.broadcast %35 : vector<8x1xf32> to vector<8x32xf32>
    %37 = arith.subf %29, %36 : vector<8x32xf32>
    %38 = arith.mulf %37, %37 : vector<8x32xf32>
    %cst_16 = arith.constant dense<0.000000e+00> : vector<8xf32>
    %39 = vector.multi_reduction <add>, %38, %cst_16 [1] : vector<8x32xf32> to vector<8xf32>
    %40 = vector.shape_cast %39 : vector<8xf32> to vector<8x1xf32>
    %cst_17 = arith.constant 3.200000e+01 : f32
    %41 = vector.broadcast %cst_17 : f32 to vector<8x1xf32>
    %42 = arith.divf %40, %41 : vector<8x1xf32>
    %43 = vector.broadcast %35 : vector<8x1xf32> to vector<8x32xf32>
    %44 = arith.subf %29, %43 : vector<8x32xf32>
    %cst_18 = arith.constant 9.99999996E-13 : f32
    %45 = vector.broadcast %cst_18 : f32 to vector<8x1xf32>
    %46 = arith.addf %42, %45 : vector<8x1xf32>
    %47 = math.rsqrt %46 : vector<8x1xf32>
    %48 = vector.broadcast %47 : vector<8x1xf32> to vector<8x32xf32>
    %49 = arith.mulf %44, %48 : vector<8x32xf32>
    %50 = vector.broadcast %30 : vector<1x32xf32> to vector<8x32xf32>
    %51 = arith.mulf %49, %50 : vector<8x32xf32>
    %52 = vector.broadcast %31 : vector<1x32xf32> to vector<8x32xf32>
    %53 = arith.addf %51, %52 : vector<8x32xf32>
    %54 = arith.truncf %53 : vector<8x32xf32> to vector<8x32xbf16>
    %c0_19 = arith.constant 0 : index
    %c0_20 = arith.constant 0 : index
    %c0_21 = arith.constant 0 : index
    %55 = vector.load %arg8[%c0_19, %c0_20, %c0_21] : memref<1x8x32xbf16, #tpu.memory_space<vmem>>, vector<1x8x32xbf16>
    %56 = vector.shape_cast %55 : vector<1x8x32xbf16> to vector<8x32xbf16>
    %57 = vector.shape_cast %54 : vector<8x32xbf16> to vector<1x8x32xbf16>
    tpu.vector_store %arg8[%c0_19, %c0_20, %c0_21], %57 {strides = array<i32>} : memref<1x8x32xbf16, #tpu.memory_space<vmem>>, vector<1x8x32xbf16>,
    return
  }
  func.func @transform_0(%arg0: i32, %arg1: i32) -> (i32, i32, i32) {
    %c0_i32 = arith.constant 0 : i32
    %c0_i32_0 = arith.constant 0 : i32
    return %arg0, %arg1, %c0_i32 : i32, i32, i32
  }
  func.func @transform_1(%arg0: i32, %arg1: i32) -> (i32, i32, i32) {
    %c0_i32 = arith.constant 0 : i32
    %c0_i32_0 = arith.constant 0 : i32
    return %arg0, %arg1, %c0_i32 : i32, i32, i32
  }
  func.func @transform_2(%arg0: i32, %arg1: i32) -> (i32, i32) {
    %c0_i32 = arith.constant 0 : i32
    %c0_i32_0 = arith.constant 0 : i32
    return %arg1, %c0_i32 : i32, i32
  }
  func.func @transform_3(%arg0: i32, %arg1: i32) -> (i32, i32) {
    %c0_i32 = arith.constant 0 : i32
    %c0_i32_0 = arith.constant 0 : i32
    %c0_i32_1 = arith.constant 0 : i32
    return %c0_i32, %c0_i32_0 : i32, i32
  }
  func.func @transform_4(%arg0: i32, %arg1: i32) -> (i32, i32) {
    %c0_i32 = arith.constant 0 : i32
    %c0_i32_0 = arith.constant 0 : i32
    %c0_i32_1 = arith.constant 0 : i32
    return %c0_i32, %c0_i32_0 : i32, i32
  }
  func.func @transform_5(%arg0: i32, %arg1: i32) -> (i32, i32) {
    %c0_i32 = arith.constant 0 : i32
    %c0_i32_0 = arith.constant 0 : i32
    %c0_i32_1 = arith.constant 0 : i32
    return %c0_i32, %c0_i32_0 : i32, i32
  }
  func.func @transform_6(%arg0: i32, %arg1: i32) -> (i32, i32, i32) {
    %c0_i32 = arith.constant 0 : i32
    %c0_i32_0 = arith.constant 0 : i32
    return %arg0, %arg1, %c0_i32 : i32, i32, i32
  }
}

</mosaic_0001>

<llo_original>
// kernel: tpu_custom_call.1
$region0: #{tpu_custom_call.1}
  #allocation0 [shape = 'u32[]', space=smem, size = 0x4, offset = 0x4, fixed_abs, tag = 'smem constant byte address 0x4 - core index']
  #allocation1 [shape = 'u32[72,128]{1,0:T(1,128)}', space=vmem, size = 0x9000, scoped, tag = 'internal scratch']
  %s0 = inlined_call_operand.vmem [shape: s32[2,8,1], index: 0, kind: input, shape index: {}]
  %s1 = inlined_call_operand.vmem [shape: bf16[2,8,32], index: 1, kind: input, shape index: {}]
  %s2 = inlined_call_operand.vmem [shape: bf16[8,32], index: 2, kind: input, shape index: {}]
  %s3 = inlined_call_operand.vmem [shape: bf16[2,32], index: 3, kind: input, shape index: {}]
  %s4 = inlined_call_operand.vmem [shape: f32[1,32], index: 4, kind: input, shape index: {}]
  %s5 = inlined_call_operand.vmem [shape: f32[1,32], index: 5, kind: input, shape index: {}]
  %s6 = inlined_call_operand.hbm [shape: bf16[2,8,32], index: 6, kind: output, shape index: {}]
  %s7 = sld [smem:[#allocation0]]
  $region57: #{tpu_custom_call.1} parent=0
    _
  %s9 = ssub.s32 1, %s7
  %s10 = scalar_select 0, %s9, %s7
  $region1: #{tpu_custom_call.1} parent=0
    #allocation2 [shape = 'u8[4096]{0}', space=vmem, size = 0x1000, scoped, tag = 'output window, operand 0']
    #allocation3 [shape = 's32[2]{0}', space=sflag, size = 0x8, scoped, tag = 'scoped memory for tpu_custom_call.1']
    %11 = vsyncpa [#allocation3], 0
    %s12 = scalar_lea.sflag [#allocation3], 1
    %13 = vsyncpa %s12, 0
    loop: start=0, step=1, limit=4
    $region2: #{tpu_custom_call.1} parent=1 // loop_pre_header
      _
    $region3: #{tpu_custom_call.1} parent=1 // loop_header
      %s15 = sphi 0, %s19
      %p16 = scmp.ge.s32.totalorder %s15, 4
      %s22 = sphi 0, %s34
      %s23 = sphi 0, %s30
      %s24 = sphi 0, %s22
      %s25 = sphi 0, %s23
      %s26 = sphi 0, %s24
      %s27 = sphi 0, %s25
      %s39 = sphi 0, %s41
      %s42 = sphi 0, %s39
      %s43 = sphi 0, %s42
      %s59 = sphi 0, %s43
      %s67 = sphi 0, %s69
      %s70 = sphi 0, %s67
      %s71 = sphi 0, %s70
      %s87 = sphi 0, %s71
      %s93 = sphi 0, %s95
      %s96 = sphi 0, %s93
      %s97 = sphi 0, %s96
      %s113 = sphi 0, %s97
      %s117 = sphi 0, %s117
      %s119 = sphi 0, %s117
      %s120 = sphi 0, %s119
      %s134 = sphi 0, %s120
      %s138 = sphi 0, %s138
      %s140 = sphi 0, %s138
      %s141 = sphi 0, %s140
      %s155 = sphi 0, %s141
      %s159 = sphi 0, %s159
      %s161 = sphi 0, %s159
      %s162 = sphi 0, %s161
      %s176 = sphi 0, %s162
      %s184 = sphi 0, %s186
      %s187 = sphi 0, %s184
      %s188 = sphi 0, %s187
      %s204 = sphi 0, %s188
    $region4: #{tpu_custom_call.1} parent=1 // loop_header_branch
      %18 = sbr.rel (%p16) target = $region8
    $region5: #{tpu_custom_call.1} parent=1 // loop_body
      %s20 = ssub.s32 %s15, 1
      %s21 = ssub.s32 %s15, 2
      %s28 = sadd.s32 1, %s23
      %p29 = scmp.ge.s32.totalorder %s28, 1
      %s30 = scalar_select %p29, 0, %s28
      %s31 = sadd.s32 1, %s22
      %s32 = scalar_select %p29, %s31, %s22
      %p33 = scmp.ge.s32.totalorder %s32, 2
      %s34 = scalar_select %p33, 0, %s32
      %s35 = ssub.s32 %s22, %s34
      %s36 = ssub.s32 %s23, %s30
      %s37 = sor.u32 %s35, %s36
      %p38 = scmp.eq.s32.totalorder %s37, 0
      %s40 = sadd.s32 %s39, 1
      %s41 = scalar_select %p38, %s39, %s40
      %p44 = pneg %p38
      %p45 = scmp.eq.s32.totalorder %s15, 1
      %p46 = por %p44, %p45
      %p47 = scmp.ne.s32.totalorder %s39, %s42
      %p48 = scmp.eq.s32.totalorder %s15, 0
      %p49 = por %p47, %p48
      %p50 = scmp.ne.s32.totalorder %s39, %s42
      %p51 = scmp.eq.s32.totalorder %s20, 1
      %p52 = por %p50, %p51
      %p53 = scmp.ne.s32.totalorder %s42, %s43
      %p54 = scmp.eq.s32.totalorder %s20, 0
      %p55 = por %p53, %p54
      %p56 = scmp.ne.s32.totalorder %s42, %s43
      %p57 = scmp.eq.s32.totalorder %s21, 1
      %p58 = por %p56, %p57
      %p60 = scmp.ne.s32.totalorder %s43, %s59
      %p61 = scmp.eq.s32.totalorder %s21, 0
      %p62 = por %p60, %p61
      %s63 = ssub.s32 %s22, %s34
      %s64 = ssub.s32 %s23, %s30
      %s65 = sor.u32 %s63, %s64
      %p66 = scmp.eq.s32.totalorder %s65, 0
      %s68 = sadd.s32 %s67, 1
      %s69 = scalar_select %p66, %s67, %s68
      %p72 = pneg %p66
      %p73 = scmp.eq.s32.totalorder %s15, 1
      %p74 = por %p72, %p73
      %p75 = scmp.ne.s32.totalorder %s67, %s70
      %p76 = scmp.eq.s32.totalorder %s15, 0
      %p77 = por %p75, %p76
      %p78 = scmp.ne.s32.totalorder %s67, %s70
      %p79 = scmp.eq.s32.totalorder %s20, 1
      %p80 = por %p78, %p79
      %p81 = scmp.ne.s32.totalorder %s70, %s71
      %p82 = scmp.eq.s32.totalorder %s20, 0
      %p83 = por %p81, %p82
      %p84 = scmp.ne.s32.totalorder %s70, %s71
      %p85 = scmp.eq.s32.totalorder %s21, 1
      %p86 = por %p84, %p85
      %p88 = scmp.ne.s32.totalorder %s71, %s87
      %p89 = scmp.eq.s32.totalorder %s21, 0
      %p90 = por %p88, %p89
      %s91 = ssub.s32 %s23, %s30
      %p92 = scmp.eq.s32.totalorder %s91, 0
      %s94 = sadd.s32 %s93, 1
      %s95 = scalar_select %p92, %s93, %s94
      %p98 = pneg %p92
      %p99 = scmp.eq.s32.totalorder %s15, 1
      %p100 = por %p98, %p99
      %p101 = scmp.ne.s32.totalorder %s93, %s96
      %p102 = scmp.eq.s32.totalorder %s15, 0
      %p103 = por %p101, %p102
      %p104 = scmp.ne.s32.totalorder %s93, %s96
      %p105 = scmp.eq.s32.totalorder %s20, 1
      %p106 = por %p104, %p105
      %p107 = scmp.ne.s32.totalorder %s96, %s97
      %p108 = scmp.eq.s32.totalorder %s20, 0
      %p109 = por %p107, %p108
      %p110 = scmp.ne.s32.totalorder %s96, %s97
      %p111 = scmp.eq.s32.totalorder %s21, 1
      %p112 = por %p110, %p111
      %p114 = scmp.ne.s32.totalorder %s97, %s113
      %p115 = scmp.eq.s32.totalorder %s21, 0
      %p116 = por %p114, %p115
      %s118 = sadd.s32 %s117, 1
      %p121 = scmp.eq.s32.totalorder %s15, 1
      %p122 = scmp.ne.s32.totalorder %s117, %s119
      %p123 = scmp.eq.s32.totalorder %s15, 0
      %p124 = por %p122, %p123
      %p125 = scmp.ne.s32.totalorder %s117, %s119
      %p126 = scmp.eq.s32.totalorder %s20, 1
      %p127 = por %p125, %p126
      %p128 = scmp.ne.s32.totalorder %s119, %s120
      %p129 = scmp.eq.s32.totalorder %s20, 0
      %p130 = por %p128, %p129
      %p131 = scmp.ne.s32.totalorder %s119, %s120
      %p132 = scmp.eq.s32.totalorder %s21, 1
      %p133 = por %p131, %p132
      %p135 = scmp.ne.s32.totalorder %s120, %s134
      %p136 = scmp.eq.s32.totalorder %s21, 0
      %p137 = por %p135, %p136
      %s139 = sadd.s32 %s138, 1
      %p142 = scmp.eq.s32.totalorder %s15, 1
      %p143 = scmp.ne.s32.totalorder %s138, %s140
      %p144 = scmp.eq.s32.totalorder %s15, 0
      %p145 = por %p143, %p144
      %p146 = scmp.ne.s32.totalorder %s138, %s140
      %p147 = scmp.eq.s32.totalorder %s20, 1
      %p148 = por %p146, %p147
      %p149 = scmp.ne.s32.totalorder %s140, %s141
      %p150 = scmp.eq.s32.totalorder %s20, 0
      %p151 = por %p149, %p150
      %p152 = scmp.ne.s32.totalorder %s140, %s141
      %p153 = scmp.eq.s32.totalorder %s21, 1
      %p154 = por %p152, %p153
      %p156 = scmp.ne.s32.totalorder %s141, %s155
      %p157 = scmp.eq.s32.totalorder %s21, 0
      %p158 = por %p156, %p157
      %s160 = sadd.s32 %s159, 1
      %p163 = scmp.eq.s32.totalorder %s15, 1
      %p164 = scmp.ne.s32.totalorder %s159, %s161
      %p165 = scmp.eq.s32.totalorder %s15, 0
      %p166 = por %p164, %p165
      %p167 = scmp.ne.s32.totalorder %s159, %s161
      %p168 = scmp.eq.s32.totalorder %s20, 1
      %p169 = por %p167, %p168
      %p170 = scmp.ne.s32.totalorder %s161, %s162
      %p171 = scmp.eq.s32.totalorder %s20, 0
      %p172 = por %p170, %p171
      %p173 = scmp.ne.s32.totalorder %s161, %s162
      %p174 = scmp.eq.s32.totalorder %s21, 1
      %p175 = por %p173, %p174
      %p177 = scmp.ne.s32.totalorder %s162, %s176
      %p178 = scmp.eq.s32.totalorder %s21, 0
      %p179 = por %p177, %p178
      %s180 = ssub.s32 %s22, %s34
      %s181 = ssub.s32 %s23, %s30
      %s182 = sor.u32 %s180, %s181
      %p183 = scmp.eq.s32.totalorder %s182, 0
      %s185 = sadd.s32 %s184, 1
      %s186 = scalar_select %p183, %s184, %s185
      %p189 = pneg %p183
      %p190 = scmp.eq.s32.totalorder %s15, 1
      %p191 = por %p189, %p190
      %p192 = scmp.ne.s32.totalorder %s184, %s187
      %p193 = scmp.eq.s32.totalorder %s15, 0
      %p194 = por %p192, %p193
      %p195 = scmp.ne.s32.totalorder %s184, %s187
      %p196 = scmp.eq.s32.totalorder %s20, 1
      %p197 = por %p195, %p196
      %p198 = scmp.ne.s32.totalorder %s187, %s188
      %p199 = scmp.eq.s32.totalorder %s20, 0
      %p200 = por %p198, %p199
      %p201 = scmp.ne.s32.totalorder %s187, %s188
      %p202 = scmp.eq.s32.totalorder %s21, 1
      %p203 = por %p201, %p202
      %p205 = scmp.ne.s32.totalorder %s188, %s204
      %p206 = scmp.eq.s32.totalorder %s21, 0
      %p207 = por %p205, %p206
      %p208 = scmp.le.s32.totalorder 1, %s15
      %p209 = scmp.lt.s32.totalorder %s15, 3
      %p210 = pnand %p208, %p209
      %p211 = pneg %p210
      // Predicated region
      $region9: #{tpu_custom_call.1} parent=5 // pred_check
        _
      $region10: #{tpu_custom_call.1} parent=5 // pred_check_branch
        %213 = sbr.rel (%p210) target = $region12
      $region11: #{tpu_custom_call.1} parent=5 // pred_region
        %s214 = ssub.s32 %s15, 1
        // Predicated region
        $region13: #{tpu_custom_call.1} parent=11 // pred_check
          %p215 = pneg %p109
        $region14: #{tpu_custom_call.1} parent=11 // pred_check_branch
          %217 = sbr.rel (%p215) target = $region16
        $region15: #{tpu_custom_call.1} parent=11 // pred_region
          %p218 = scmp.lt.s32.totalorder %s25, 0
          %s219 = scalar_select %p218, %s25, 0
          %s220 = smul.addr %s219, 4
          %s221 = scalar_lea.vmem %s2, %s220
        $region16: #{tpu_custom_call.1} parent=11 // pred_fallthru
          _
        // Predicated region
        $region17: #{tpu_custom_call.1} parent=11 // pred_check
          %p222 = pneg %p130
        $region18: #{tpu_custom_call.1} parent=11 // pred_check_branch
          %224 = sbr.rel (%p222) target = $region20
        $region19: #{tpu_custom_call.1} parent=11 // pred_region
          _
        $region20: #{tpu_custom_call.1} parent=11 // pred_fallthru
          _
        // Predicated region
        $region21: #{tpu_custom_call.1} parent=11 // pred_check
          %p225 = pneg %p151
        $region22: #{tpu_custom_call.1} parent=11 // pred_check_branch
          %227 = sbr.rel (%p225) target = $region24
        $region23: #{tpu_custom_call.1} parent=11 // pred_region
          _
        $region24: #{tpu_custom_call.1} parent=11 // pred_fallthru
          _
        // Predicated region
        $region25: #{tpu_custom_call.1} parent=11 // pred_check
          %p228 = pneg %p172
        $region26: #{tpu_custom_call.1} parent=11 // pred_check_branch
          %230 = sbr.rel (%p228) target = $region28
        $region27: #{tpu_custom_call.1} parent=11 // pred_region
          _
        $region28: #{tpu_custom_call.1} parent=11 // pred_fallthru
          _
      $region12: #{tpu_custom_call.1} parent=5 // pred_fallthru
        _
      %p231 = scmp.lt.s32.totalorder %s15, 2
      // Predicated region
      $region29: #{tpu_custom_call.1} parent=5 // pred_check
        %p232 = pneg %p231
      $region30: #{tpu_custom_call.1} parent=5 // pred_check_branch
        %234 = sbr.rel (%p232) target = $region32
      $region31: #{tpu_custom_call.1} parent=5 // pred_region
        // Predicated region
        $region33: #{tpu_custom_call.1} parent=31 // pred_check
          %p235 = pneg %p49
        $region34: #{tpu_custom_call.1} parent=31 // pred_check_branch
          %237 = sbr.rel (%p235) target = $region36
        $region35: #{tpu_custom_call.1} parent=31 // pred_region
          %p238 = scmp.lt.s32.totalorder %s22, 1
          %s239 = scalar_select %p238, %s22, 1
          %p240 = scmp.lt.s32.totalorder %s23, 0
          %s241 = scalar_select %p240, %s23, 0
          %s242 = sadd.s32 %s241, %s239
          %s243 = smul.addr %s242, 8
          %s244 = scalar_lea.vmem %s0, %s243
        $region36: #{tpu_custom_call.1} parent=31 // pred_fallthru
          _
        // Predicated region
        $region37: #{tpu_custom_call.1} parent=31 // pred_check
          %p245 = pneg %p77
        $region38: #{tpu_custom_call.1} parent=31 // pred_check_branch
          %247 = sbr.rel (%p245) target = $region40
        $region39: #{tpu_custom_call.1} parent=31 // pred_region
          %p248 = scmp.lt.s32.totalorder %s22, 1
          %s249 = scalar_select %p248, %s22, 1
          %p250 = scmp.lt.s32.totalorder %s23, 0
          %s251 = scalar_select %p250, %s23, 0
          %s252 = sadd.s32 %s251, %s249
          %s253 = smul.addr %s252, 4
          %s254 = scalar_lea.vmem %s1, %s253
        $region40: #{tpu_custom_call.1} parent=31 // pred_fallthru
          _
      $region32: #{tpu_custom_call.1} parent=5 // pred_fallthru
        _
      %p255 = scmp.le.s32.totalorder 1, %s15
      %p256 = scmp.lt.s32.totalorder %s15, 3
      %p257 = pnand %p255, %p256
      %p258 = pneg %p257
      // Predicated region
      $region41: #{tpu_custom_call.1} parent=5 // pred_check
        _
      $region42: #{tpu_custom_call.1} parent=5 // pred_check_branch
        %260 = sbr.rel (%p257) target = $region44
      $region43: #{tpu_custom_call.1} parent=5 // pred_region
        %s261 = ssub.s32 %s15, 1
        %p262 = scmp.lt.s32.totalorder %s24, 1
        %s263 = scalar_select %p262, %s24, 1
        %p264 = scmp.lt.s32.totalorder %s25, 0
        %s265 = scalar_select %p264, %s25, 0
        %s266 = sadd.s32 %s265, %s263
        %s267 = smul.addr %s266, 8
        %s268 = scalar_lea.vmem %s0, %s267
        %p269 = pneg %p55
        %p270 = pneg %p52
        %p271 = scmp.lt.s32.totalorder %s24, 1
        %s272 = scalar_select %p271, %s24, 1
        %p273 = scmp.lt.s32.totalorder %s25, 0
        %s274 = scalar_select %p273, %s25, 0
        %s275 = sadd.s32 %s274, %s272
        %s276 = smul.addr %s275, 4
        %s277 = scalar_lea.vmem %s1, %s276
        %p278 = pneg %p83
        %p279 = pneg %p80
        %p280 = scmp.lt.s32.totalorder %s25, 0
        %s281 = scalar_select %p280, %s25, 0
        %s282 = smul.addr %s281, 4
        %s283 = scalar_lea.vmem %s2, %s282
        %p284 = pneg %p109
        %p285 = pneg %p106
        %p286 = pneg %p130
        %p287 = pneg %p127
        %p288 = pneg %p151
        %p289 = pneg %p148
        %p290 = pneg %p172
        %p291 = pneg %p169
        %p292 = pneg %p200
        %p293 = pneg %p197
        %s294 = sand.u32 %s187, 1
        %s295 = scalar_lea.sflag [#allocation3], %s294
        %s296 = sand.u32 %s187, 1
        %s297 = smul.addr %s296, 4
        %s298 = scalar_lea.vmem [#allocation2], %s297
        %p299 = scmp.lt.s32.totalorder %s24, 1
        %s300 = scalar_select %p299, %s24, 1
        %p301 = scmp.lt.s32.totalorder %s25, 0
        %s302 = scalar_select %p301, %s25, 0
        %s303 = sadd.s32 %s302, %s300
        %s304 = smul.addr %s303, 8
        %s305 = scalar_lea.vmem %s0, %s304
        %p306 = scmp.lt.s32.totalorder %s24, 1
        %s307 = scalar_select %p306, %s24, 1
        %p308 = scmp.lt.s32.totalorder %s25, 0
        %s309 = scalar_select %p308, %s25, 0
        %s310 = sadd.s32 %s309, %s307
        %s311 = smul.addr %s310, 4
        %s312 = scalar_lea.vmem %s1, %s311
        %p313 = scmp.lt.s32.totalorder %s25, 0
        %s314 = scalar_select %p313, %s25, 0
        %s315 = smul.addr %s314, 4
        %s316 = scalar_lea.vmem %s2, %s315
        %v317 = vld [vmem:[%s312] sm:$0xf]
        %v318 = vunpack.c.l.bf16 %v317
        %v319 = vld [vmem:[%s316] sm:$0xf]
        %v320 = vunpack.c.l.bf16 %v319
        %v321 = vadd.f32 %v318, %v320
        %v322 = vld [vmem:[%s305] sm:$0xff]
        %v323 = vld [vmem:[%s3] sm:$0x1]
        %v324 = vunpack.c.l.bf16 %v323
        %vm325 = vcmp.eq.s32.totalorder %v322, 0
        %v326 = vsel %vm325, 1, 0
        %327 = vset.pattern.permute.xlu0 0
        %328 = vperm.xlu0 %327, %v326
        %v329 = vpop.permute.xlu0 %328
        %vm330 = vcmp.eq.s32.totalorder %v329, 1
        %v331 = vperm.slane %v324, 0
        %v332 = vsel %vm330, %v331, 0.0
        %v333 = vadd.f32 %v321, %v332
        %vm334 = vcmp.eq.s32.totalorder %v322, 1
        %v335 = vsel %vm334, 1, 0
        %336 = vset.pattern.permute.xlu0 0
        %337 = vperm.xlu0 %336, %v335
        %v338 = vpop.permute.xlu0 %337
        %vm339 = vcmp.eq.s32.totalorder %v338, 1
        %v340 = vperm.slane %v324, 1
        %v341 = vsel %vm339, %v340, 0.0
        %v342 = vadd.f32 %v333, %v341
        %v343 = vld [vmem:[%s4] sm:$0x1]
        %v344 = vld [vmem:[%s5] sm:$0x1]
        %vm345 = vcmask 261120
        %v346 = vsel %vm345, %v342, 0.0
        %347 = vadd.xlane.f32.xlu0 %v346
        %v348 = vpop.xlane.xlu0 %347
        %v349 = vrcp.pop 32.0
        %v350 = vmul.f32 32.0, %v349
        %v351 = vsub.f32 1.0, %v350
        %v352 = vmul.f32 %v349, %v351
        %v353 = vadd.f32 %v349, %v352
        %vm354 = vweird.f32 %v349
        %v355 = vsel %vm354, %v349, %v353
        %v356 = vmul.f32 %v348, %v355
        %v357 = vsub.f32 %v342, %v356
        %v358 = vmul.f32 %v357, %v357
        %v359 = vsel %vm345, %v358, 0.0
        %360 = vadd.xlane.f32.xlu0 %v359
        %v361 = vpop.xlane.xlu0 %360
        %v362 = vmul.f32 %v361, %v355
        %v363 = vadd.f32 %v362, 1e-12
        %v364 = vrsqrt.pop %v363
        %v365 = vmul.f32 %v364, %v363
        %v366 = vmul.f32 %v365, %v364
        %v367 = vmul.f32 0.5, %v366
        %v368 = vsub.f32 1.5, %v367
        %v369 = vmul.f32 %v364, %v368
        %vm370 = vweird.f32 %v363
        %vm371 = vweird.f32 %v364
        %vm372 = vmor %vm370, %vm371
        %v373 = vsel %vm372, %v364, %v369
        %v374 = vmul.f32 %v357, %v373
        %v376 = vperm.slane %v343, 0
        %v378 = vmul.f32 %v374, %v376
        %v380 = vperm.slane %v344, 0
        %v382 = vadd.f32 %v378, %v380
        %v383 = vpack.c.bf16 %v382, %v382
        %vm384 = vcmask 257024
        %385 = vst.msk [vmem:[%s298] sm:$0xf] %vm384, %v383
        %s386 = sand.u32 %s187, 1
        %s387 = scalar_lea.sflag [#allocation3], %s386
        %s388 = sand.u32 %s187, 1
        %s389 = smul.addr %s388, 4
        %s390 = scalar_lea.vmem [#allocation2], %s389
        // Predicated region
        $region45: #{tpu_custom_call.1} parent=43 // pred_check
          %p391 = pneg %p197
        $region46: #{tpu_custom_call.1} parent=43 // pred_check_branch
          %393 = sbr.rel (%p391) target = $region48
        $region47: #{tpu_custom_call.1} parent=43 // pred_region
          %395 = vsyncadd %s387, 0
          %s396 = sadd.s32 %s25, %s24
          %s397 = smul.addr %s396, 4
          %s398 = scalar_lea.hbm %s6, %s397
          %s400 = sshll.u32 %s390, 4
          %s401 = int_to_ptr.vmem [resolvable:$true] %s400
          %s402 = sshll.u32 %s398, 4
          %s403 = int_to_ptr.hbm [resolvable:$true] %s402
          %405 = dma.vmem_to_hbm [thread:$0]  %s401, 64, %s403, %s387
        $region48: #{tpu_custom_call.1} parent=43 // pred_fallthru
          _
      $region44: #{tpu_custom_call.1} parent=5 // pred_fallthru
        _
      %p406 = scmp.le.s32.totalorder 2, %s15
      // Predicated region
      $region49: #{tpu_custom_call.1} parent=5 // pred_check
        %p407 = pneg %p406
      $region50: #{tpu_custom_call.1} parent=5 // pred_check_branch
        %409 = sbr.rel (%p407) target = $region52
      $region51: #{tpu_custom_call.1} parent=5 // pred_region
        %s410 = ssub.s32 %s15, 2
        // Predicated region
        $region53: #{tpu_custom_call.1} parent=51 // pred_check
          %p411 = pneg %p203
        $region54: #{tpu_custom_call.1} parent=51 // pred_check_branch
          %413 = sbr.rel (%p411) target = $region56
        $region55: #{tpu_custom_call.1} parent=51 // pred_region
          %s414 = sand.u32 %s188, 1
          %s415 = scalar_lea.sflag [#allocation3], %s414
          %s416 = sand.u32 %s188, 1
          %s417 = smul.addr %s416, 4
          %s418 = scalar_lea.vmem [#allocation2], %s417
          %420 = dma.done %s415, 64
        $region56: #{tpu_custom_call.1} parent=51 // pred_fallthru
          _
      $region52: #{tpu_custom_call.1} parent=5 // pred_fallthru
        _
    $region6: #{tpu_custom_call.1} parent=1 // loop_footer
      %s19 = sadd.s32 1, %s15
    $region7: #{tpu_custom_call.1} parent=1 // loop_footer_branch
      %14 = sbr.rel target = $region3
    $region8: #{tpu_custom_call.1} parent=1 // loop_exit
      _
    %421 = vsyncpa [#allocation3], 1
    %s422 = scalar_lea.sflag [#allocation3], 1
    %423 = vsyncpa %s422, 1

</llo_original>
